<compile_context>
chip_gen: v6e
topology: v6e:2x2x1
jax: 0.10.0
libtpu: 0.0.40
codegen_flags: <defaults>
</compile_context>

<pallas_src>
import jax
import jax.numpy as jnp
from jax import lax
from jax.experimental import pallas as pl
from jax.experimental.pallas import tpu as pltpu

BN_EPS = 1e-5   # PyTorch BatchNorm2d default


def _round_up(v, m):
    return (v + m - 1) // m * m


def _conv_stats_kernel(p_ref, w_ref, stats_ref):
    # p_ref: (K, T) bf16 transposed im2col patches for one spatial tile.
    # w_ref: (C_pad, K) bf16 weights.  stats_ref: (C_pad, 2) f32 per-tile
    # partials: column 0 = per-channel sum, column 1 = per-channel sum of
    # squares over the tile's T real output positions (no padded positions).
    acc = jnp.dot(w_ref[...], p_ref[...], preferred_element_type=jnp.float32)
    stats_ref[:, 0:1] = jnp.sum(acc, axis=1, keepdims=True)
    stats_ref[:, 1:2] = jnp.sum(acc * acc, axis=1, keepdims=True)


def _conv_norm_kernel(p_ref, w_ref, scale_ref, shift_ref, o_ref):
    # Recompute the conv tile (K is tiny; cheaper than spilling an f32 conv
    # intermediate to HBM) and apply the folded BN affine y = conv*scale+shift.
    acc = jnp.dot(w_ref[...], p_ref[...], preferred_element_type=jnp.float32)
    y = acc * scale_ref[...] + shift_ref[...]          # (C_pad, T), f32 math
    o_ref[...] = y[:o_ref.shape[0], :].astype(o_ref.dtype)


def _pick_tiling(K, c_pad, hw):
    """Spatial tile width (lane dim of every block) + per-generation VMEM cap."""
    try:
        vmem_cap = int(pltpu.get_tpu_info().vmem_capacity_bytes)
    except Exception:  # conservative default if the query is unavailable
        vmem_cap = 64 * 1024 * 1024
    # <= ~48 MiB on v7x (64 MiB physical), <= 96 MiB on v5e/v6e (128 MiB).
    vmem_limit = int(min(vmem_cap * 3 // 4, 96 * 1024 * 1024))
    # Double-buffered streaming blocks: bf16 patches (K rows) + f32 output
    # (c_pad rows) per tile column; keep them within half the VMEM limit.
    bytes_per_col = 2 * (K * 2 + c_pad * 4)
    cap = max(128, (vmem_limit // 2 // bytes_per_col) // 128 * 128)
    target = min(2048, cap)           # per-step overhead amortized by ~1-2K cols
    if hw % 128 == 0:
        tile = max(128, (min(target, hw) // 128) * 128)
        while hw % tile != 0:         # largest 128-multiple divisor <= target
            tile -= 128
    else:
        # Block minor dim == full array dim is always legal; fine for small /
        # odd spatial sizes.  (Very large odd Ho*Wo would want column padding
        # plus stat masking — not needed here.)
        tile = hw
    return tile, vmem_limit


def conv2d_batchnorm(x, w, bias, gamma, beta, *, stride, padding):
    """x: (N, C_in, H, W); w: (C_out, C_in, kH, kW) (PyTorch Conv2d layout).

    Conv2d(stride, padding, bias=True) followed by BatchNorm2d in training
    mode (batch statistics), matching conv2DBatchNorm.forward().  The conv
    bias cancels exactly under batch-statistic BN, so it is folded away
    analytically.  NOTE: if any additive per-channel term is ever reintroduced
    inside the conv kernels, keep the no-padded-positions invariant (tiles
    cover exactly the real Ho*Wo outputs) or the statistics will be biased.
    """
    del bias  # mean(conv + b) = mean(conv) + b  =>  b cancels in the BN output

    N, C_in, H, W = x.shape
    C_out, _, kH, kW = w.shape
    Ho = (H + 2 * padding - kH) // stride + 1
    Wo = (W + 2 * padding - kW) // stride + 1
    HW = Ho * Wo
    M = N * HW
    K = C_in * kH * kW
    # Sublane-align the channel dim of the (C, K) weight / (C, T) results.
    # (For very large C_out a 256 multiple keeps the 2x256x256 MXU fully fed
    #  on v6e/v7x if the kernel ever becomes compute-bound.)
    C_pad = _round_up(C_out, 8)

    tile_hw, vmem_limit = _pick_tiling(K, C_pad, HW)
    n_hw = HW // tile_hw
    grid = (N, n_hw)

    # ---------------- host glue: transposed per-image im2col ----------------
    # TODO(synk): fuse into the kernels with overlapping-row-window DMAs
    # (pl.ANY + make_async_copy); `patches` is a kH*kW expansion of x in HBM.
    x_pad = jnp.pad(x.astype(jnp.bfloat16),
                    ((0, 0), (0, 0), (padding, padding), (padding, padding)))
    slices = [
        x_pad[:, :,
              kh:kh + (Ho - 1) * stride + 1:stride,
              kw:kw + (Wo - 1) * stride + 1:stride]
        for kh in range(kH) for kw in range(kW)
    ]
    patches = jnp.stack(slices, axis=2)          # (N, C_in, kH*kW, Ho, Wo)
    patches = patches.reshape(N, K, HW)          # K ordered (c_in, kh, kw)

    # PyTorch weight (C_out, C_in, kH, kW) -> (C_pad, K), same K ordering.
    w_mat = w.astype(jnp.bfloat16).reshape(C_out, K)
    w_mat = jnp.pad(w_mat, ((0, C_pad - C_out), (0, 0)))

    cparams = pltpu.CompilerParams(
        dimension_semantics=("parallel", "parallel"),   # megacore on v7x
        vmem_limit_bytes=vmem_limit)

    patches_spec = pl.BlockSpec((None, K, tile_hw), lambda n, j: (n, 0, j))
    weight_spec = pl.BlockSpec((C_pad, K), lambda n, j: (0, 0))

    # -------- pass 1: per-tile per-channel sum / sum-of-squares -------------
    stats = pl.pallas_call(
        _conv_stats_kernel,
        out_shape=jax.ShapeDtypeStruct((N * n_hw, C_pad, 2), jnp.float32),
        grid=grid,
        in_specs=[patches_spec, weight_spec],
        out_specs=pl.BlockSpec((None, C_pad, 2),
                               lambda n, j: (n * n_hw + j, 0, 0)),
        compiler_params=cparams,
    )(patches, w_mat)

    # -------- tiny host reduction + folded BN constants ---------------------
    sum1 = jnp.sum(stats[:, :, 0], axis=0)       # (C_pad,)
    sum2 = jnp.sum(stats[:, :, 1], axis=0)
    mean = sum1 / M
    # E[x^2] - E[x]^2 in f32, clamped: adequate while |mean| is not >> std
    # (true for conv activations here); a centered second pass would be more
    # robust for extreme operating ranges.
    var = jnp.maximum(sum2 / M - mean * mean, 0.0)
    gamma_p = jnp.pad(gamma.astype(jnp.float32), (0, C_pad - C_out))
    beta_p = jnp.pad(beta.astype(jnp.float32), (0, C_pad - C_out))
    scale = (gamma_p * lax.rsqrt(var + BN_EPS)).reshape(C_pad, 1)
    shift = (beta_p).reshape(C_pad, 1) - mean.reshape(C_pad, 1) * scale

    # -------- pass 2: conv recompute + fused normalize, NCHW output ---------
    out = pl.pallas_call(
        _conv_norm_kernel,
        out_shape=jax.ShapeDtypeStruct((N, C_out, HW), jnp.float32),
        grid=grid,
        in_specs=[patches_spec, weight_spec,
                  pl.BlockSpec((C_pad, 1), lambda n, j: (0, 0)),
                  pl.BlockSpec((C_pad, 1), lambda n, j: (0, 0))],
        out_specs=pl.BlockSpec((None, C_out, tile_hw), lambda n, j: (n, 0, j)),
        compiler_params=cparams,
    )(patches, w_mat, scale, shift)

    return out.reshape(N, C_out, Ho, Wo)   # free reshape; already NCHW order


def _reference(x, w, bias, gamma, beta, *, stride, padding):
    """Pure-JAX reference: Conv2d (bf16 operands, f32 accum, matching the
    kernel's MXU precision) + training-mode BatchNorm2d in f32."""
    conv = lax.conv_general_dilated(
        x.astype(jnp.bfloat16), w.astype(jnp.bfloat16),
        window_strides=(stride, stride),
        padding=[(padding, padding), (padding, padding)],
        dimension_numbers=("NCHW", "OIHW", "NCHW"),
        preferred_element_type=jnp.float32)
    conv = conv + bias[None, :, None, None]
    mean = conv.mean(axis=(0, 2, 3), keepdims=True)
    var = ((conv - mean) ** 2).mean(axis=(0, 2, 3), keepdims=True)
    return (gamma[None, :, None, None] * (conv - mean)
            / jnp.sqrt(var + BN_EPS) + beta[None, :, None, None])


if __name__ == "__main__":
    # Module hyper-params (small, consistent with the PyTorch module)
    in_channels, n_filters = 4, 8
    k_size, stride, padding = 3, 1, 1
    N, H, W = 2, 16, 16

    key = jax.random.PRNGKey(0)
    kx, kw_, kb, kg, kbt = jax.random.split(key, 5)

    x = jax.random.normal(kx, (N, in_channels, H, W), jnp.float32)
    w = jax.random.normal(kw_, (n_filters, in_channels, k_size, k_size),
                          jnp.float32) * 0.1
    bias = jax.random.normal(kb, (n_filters,), jnp.float32) * 0.1
    gamma = 1.0 + 0.1 * jax.random.normal(kg, (n_filters,), jnp.float32)
    beta = 0.1 * jax.random.normal(kbt, (n_filters,), jnp.float32)

    out = conv2d_batchnorm(x, w, bias, gamma, beta,
                           stride=stride, padding=padding)
    out = jax.block_until_ready(out)

    ref = _reference(x, w, bias, gamma, beta, stride=stride, padding=padding)
    Ho = (H + 2 * padding - k_size) // stride + 1
    Wo = (W + 2 * padding - k_size) // stride + 1
    assert out.shape == ref.shape == (N, n_filters, Ho, Wo)
    max_err = jnp.max(jnp.abs(out - ref))
    assert jnp.allclose(out, ref, rtol=2e-3, atol=2e-3), \
        f"mismatch vs reference (max abs err {max_err})"

    print("KERNEL_OK")
</pallas_src>

<mosaic_0001>
module attributes {stable_mosaic.version = 11 : i64} {
  func.func @_conv_stats_kernel(%arg0: i32, %arg1: i32, %arg2: memref<1x36x256xbf16, #tpu.memory_space<vmem>>, %arg3: memref<8x36xbf16, #tpu.memory_space<vmem>>, %arg4: memref<1x8x2xf32, #tpu.memory_space<vmem>>) attributes {dimension_semantics = [#tpu.dimension_semantics<parallel>, #tpu.dimension_semantics<parallel>], iteration_bounds = array<i64: 2, 1>, scalar_prefetch = 0 : i64, scratch_operands = 0 : i64, tpu.core_type = #tpu.core_type<tc>, window_params = [{transform_indices = @transform_0, window_bounds = array<i64: 1, 36, 256>}, {pipeline_mode = #tpu.pipeline_mode<synchronous>, transform_indices = @transform_1, window_bounds = array<i64: 8, 36>}, {transform_indices = @transform_2, window_bounds = array<i64: 1, 8, 2>}]} {
    %c0 = arith.constant 0 : index
    %c0_0 = arith.constant 0 : index
    %0 = vector.load %arg3[%c0, %c0_0] : memref<8x36xbf16, #tpu.memory_space<vmem>>, vector<8x36xbf16>
    %c0_1 = arith.constant 0 : index
    %c0_2 = arith.constant 0 : index
    %c0_3 = arith.constant 0 : index
    %1 = vector.load %arg2[%c0_1, %c0_2, %c0_3] : memref<1x36x256xbf16, #tpu.memory_space<vmem>>, vector<1x36x256xbf16>
    %2 = vector.shape_cast %1 : vector<1x36x256xbf16> to vector<36x256xbf16>
    %cst = arith.constant dense<0.000000e+00> : vector<8x256xf32>
    %3 = tpu.matmul %0, %2, %cst {dimension_numbers = #tpu.dot_dimension_numbers<[1], [0], [0], [1], [0, 0, 1, 1], [], []>} : vector<8x36xbf16>, vector<36x256xbf16>, vector<8x256xf32> -> vector<8x256xf32>
    %cst_4 = arith.constant dense<0.000000e+00> : vector<8xf32>
    %4 = vector.multi_reduction <add>, %3, %cst_4 [1] : vector<8x256xf32> to vector<8xf32>
    %5 = vector.shape_cast %4 : vector<8xf32> to vector<8x1xf32>
    %c0_5 = arith.constant 0 : index
    %c0_6 = arith.constant 0 : index
    %c0_7 = arith.constant 0 : index
    %6 = vector.load %arg4[%c0_5, %c0_6, %c0_7] : memref<1x8x2xf32, #tpu.memory_space<vmem>>, vector<1x8x1xf32>
    %7 = vector.shape_cast %6 : vector<1x8x1xf32> to vector<8x1xf32>
    %8 = vector.shape_cast %5 : vector<8x1xf32> to vector<1x8x1xf32>
    tpu.vector_store %arg4[%c0_5, %c0_6, %c0_7], %8 {strides = array<i32>} : memref<1x8x2xf32, #tpu.memory_space<vmem>>, vector<1x8x1xf32>,
    %9 = arith.mulf %3, %3 : vector<8x256xf32>
    %cst_8 = arith.constant dense<0.000000e+00> : vector<8xf32>
    %10 = vector.multi_reduction <add>, %9, %cst_8 [1] : vector<8x256xf32> to vector<8xf32>
    %11 = vector.shape_cast %10 : vector<8xf32> to vector<8x1xf32>
    %c0_9 = arith.constant 0 : index
    %c0_10 = arith.constant 0 : index
    %c1 = arith.constant 1 : index
    %12 = vector.load %arg4[%c0_9, %c0_10, %c1] : memref<1x8x2xf32, #tpu.memory_space<vmem>>, vector<1x8x1xf32>
    %13 = vector.shape_cast %12 : vector<1x8x1xf32> to vector<8x1xf32>
    %14 = vector.shape_cast %11 : vector<8x1xf32> to vector<1x8x1xf32>
    tpu.vector_store %arg4[%c0_9, %c0_10, %c1], %14 {strides = array<i32>} : memref<1x8x2xf32, #tpu.memory_space<vmem>>, vector<1x8x1xf32>,
    return
  }
  func.func @transform_0(%arg0: i32, %arg1: i32) -> (i32, i32, i32) {
    %c0_i32 = arith.constant 0 : i32
    %c0_i32_0 = arith.constant 0 : i32
    return %arg0, %c0_i32, %arg1 : i32, i32, i32
  }
  func.func @transform_1(%arg0: i32, %arg1: i32) -> (i32, i32) {
    %c0_i32 = arith.constant 0 : i32
    %c0_i32_0 = arith.constant 0 : i32
    %c0_i32_1 = arith.constant 0 : i32
    return %c0_i32, %c0_i32_0 : i32, i32
  }
  func.func @transform_2(%arg0: i32, %arg1: i32) -> (i32, i32, i32) {
    %c1_i32 = arith.constant 1 : i32
    %0 = arith.muli %arg0, %c1_i32 : i32
    %1 = arith.addi %0, %arg1 : i32
    %c0_i32 = arith.constant 0 : i32
    %c0_i32_0 = arith.constant 0 : i32
    %c0_i32_1 = arith.constant 0 : i32
    return %1, %c0_i32, %c0_i32_0 : i32, i32, i32
  }
}

</mosaic_0001>

<llo_original>
// kernel: tpu_custom_call.1
$region0: #{tpu_custom_call.1}
  #allocation0 [shape = 'u32[]', space=smem, size = 0x4, offset = 0x4, fixed_abs, tag = 'smem constant byte address 0x4 - core index']
  #allocation1 [shape = 'u32[144,128]{1,0:T(1,128)}', space=vmem, size = 0x12000, scoped, tag = 'internal scratch']
  %s0 = inlined_call_operand.vmem [shape: bf16[2,36,256], index: 0, kind: input, shape index: {}]
  %s1 = inlined_call_operand.vmem [shape: bf16[8,36], index: 1, kind: input, shape index: {}]
  %s2 = inlined_call_operand.vmem [shape: f32[2,8,2], index: 2, kind: output, shape index: {}]
  %s3 = sld [smem:[#allocation0]]
  $region41: #{tpu_custom_call.1} parent=0
    _
  %s5 = ssub.s32 1, %s3
  %s6 = scalar_select 0, %s5, %s3
  loop: start=0, step=1, limit=4
  $region2: #{tpu_custom_call.1} parent=0 // loop_pre_header
    _
  $region3: #{tpu_custom_call.1} parent=0 // loop_header
    %s8 = sphi 0, %s12
    %p9 = scmp.ge.s32.totalorder %s8, 4
    %s15 = sphi 0, %s27
    %s16 = sphi 0, %s23
    %s17 = sphi 0, %s15
    %s18 = sphi 0, %s16
    %s19 = sphi 0, %s17
    %s20 = sphi 0, %s18
    %s32 = sphi 0, %s34
    %s35 = sphi 0, %s32
    %s36 = sphi 0, %s35
    %s52 = sphi 0, %s36
    %s56 = sphi 0, %s56
    %s58 = sphi 0, %s56
    %s59 = sphi 0, %s58
    %s73 = sphi 0, %s59
    %s81 = sphi 0, %s83
    %s84 = sphi 0, %s81
    %s85 = sphi 0, %s84
    %s101 = sphi 0, %s85
  $region4: #{tpu_custom_call.1} parent=0 // loop_header_branch
    %11 = sbr.rel (%p9) target = $region8
  $region5: #{tpu_custom_call.1} parent=0 // loop_body
    %s13 = ssub.s32 %s8, 1
    %s14 = ssub.s32 %s8, 2
    %s21 = sadd.s32 1, %s16
    %p22 = scmp.ge.s32.totalorder %s21, 1
    %s23 = scalar_select %p22, 0, %s21
    %s24 = sadd.s32 1, %s15
    %s25 = scalar_select %p22, %s24, %s15
    %p26 = scmp.ge.s32.totalorder %s25, 2
    %s27 = scalar_select %p26, 0, %s25
    %s28 = ssub.s32 %s15, %s27
    %s29 = ssub.s32 %s16, %s23
    %s30 = sor.u32 %s28, %s29
    %p31 = scmp.eq.s32.totalorder %s30, 0
    %s33 = sadd.s32 %s32, 1
    %s34 = scalar_select %p31, %s32, %s33
    %p37 = pneg %p31
    %p38 = scmp.eq.s32.totalorder %s8, 1
    %p39 = por %p37, %p38
    %p40 = scmp.ne.s32.totalorder %s32, %s35
    %p41 = scmp.eq.s32.totalorder %s8, 0
    %p42 = por %p40, %p41
    %p43 = scmp.ne.s32.totalorder %s32, %s35
    %p44 = scmp.eq.s32.totalorder %s13, 1
    %p45 = por %p43, %p44
    %p46 = scmp.ne.s32.totalorder %s35, %s36
    %p47 = scmp.eq.s32.totalorder %s13, 0
    %p48 = por %p46, %p47
    %p49 = scmp.ne.s32.totalorder %s35, %s36
    %p50 = scmp.eq.s32.totalorder %s14, 1
    %p51 = por %p49, %p50
    %p53 = scmp.ne.s32.totalorder %s36, %s52
    %p54 = scmp.eq.s32.totalorder %s14, 0
    %p55 = por %p53, %p54
    %s57 = sadd.s32 %s56, 1
    %p60 = scmp.eq.s32.totalorder %s8, 1
    %p61 = scmp.ne.s32.totalorder %s56, %s58
    %p62 = scmp.eq.s32.totalorder %s8, 0
    %p63 = por %p61, %p62
    %p64 = scmp.ne.s32.totalorder %s56, %s58
    %p65 = scmp.eq.s32.totalorder %s13, 1
    %p66 = por %p64, %p65
    %p67 = scmp.ne.s32.totalorder %s58, %s59
    %p68 = scmp.eq.s32.totalorder %s13, 0
    %p69 = por %p67, %p68
    %p70 = scmp.ne.s32.totalorder %s58, %s59
    %p71 = scmp.eq.s32.totalorder %s14, 1
    %p72 = por %p70, %p71
    %p74 = scmp.ne.s32.totalorder %s59, %s73
    %p75 = scmp.eq.s32.totalorder %s14, 0
    %p76 = por %p74, %p75
    %s77 = sadd.s32 %s15, %s16
    %s78 = sadd.s32 %s27, %s23
    %s79 = ssub.s32 %s77, %s78
    %p80 = scmp.eq.s32.totalorder %s79, 0
    %s82 = sadd.s32 %s81, 1
    %s83 = scalar_select %p80, %s81, %s82
    %p86 = pneg %p80
    %p87 = scmp.eq.s32.totalorder %s8, 1
    %p88 = por %p86, %p87
    %p89 = scmp.ne.s32.totalorder %s81, %s84
    %p90 = scmp.eq.s32.totalorder %s8, 0
    %p91 = por %p89, %p90
    %p92 = scmp.ne.s32.totalorder %s81, %s84
    %p93 = scmp.eq.s32.totalorder %s13, 1
    %p94 = por %p92, %p93
    %p95 = scmp.ne.s32.totalorder %s84, %s85
    %p96 = scmp.eq.s32.totalorder %s13, 0
    %p97 = por %p95, %p96
    %p98 = scmp.ne.s32.totalorder %s84, %s85
    %p99 = scmp.eq.s32.totalorder %s14, 1
    %p100 = por %p98, %p99
    %p102 = scmp.ne.s32.totalorder %s85, %s101
    %p103 = scmp.eq.s32.totalorder %s14, 0
    %p104 = por %p102, %p103
    %p105 = scmp.le.s32.totalorder 1, %s8
    %p106 = scmp.lt.s32.totalorder %s8, 3
    %p107 = pnand %p105, %p106
    %p108 = pneg %p107
    // Predicated region
    $region9: #{tpu_custom_call.1} parent=5 // pred_check
      _
    $region10: #{tpu_custom_call.1} parent=5 // pred_check_branch
      %110 = sbr.rel (%p107) target = $region12
    $region11: #{tpu_custom_call.1} parent=5 // pred_region
      %s111 = ssub.s32 %s8, 1
      // Predicated region
      $region13: #{tpu_custom_call.1} parent=11 // pred_check
        %p112 = pneg %p69
      $region14: #{tpu_custom_call.1} parent=11 // pred_check_branch
        %114 = sbr.rel (%p112) target = $region16
      $region15: #{tpu_custom_call.1} parent=11 // pred_region
        _
      $region16: #{tpu_custom_call.1} parent=11 // pred_fallthru
        _
    $region12: #{tpu_custom_call.1} parent=5 // pred_fallthru
      _
    %p115 = scmp.lt.s32.totalorder %s8, 2
    // Predicated region
    $region17: #{tpu_custom_call.1} parent=5 // pred_check
      %p116 = pneg %p115
    $region18: #{tpu_custom_call.1} parent=5 // pred_check_branch
      %118 = sbr.rel (%p116) target = $region20
    $region19: #{tpu_custom_call.1} parent=5 // pred_region
      // Predicated region
      $region21: #{tpu_custom_call.1} parent=19 // pred_check
        %p119 = pneg %p42
      $region22: #{tpu_custom_call.1} parent=19 // pred_check_branch
        %121 = sbr.rel (%p119) target = $region24
      $region23: #{tpu_custom_call.1} parent=19 // pred_region
        %s122 = smul.u32 2, %s16
        %p123 = scmp.lt.s32.totalorder %s15, 1
        %s124 = scalar_select %p123, %s15, 1
        %p125 = scmp.lt.s32.totalorder %s122, 1
        %s126 = scalar_select %p125, %s122, 1
        %s127 = smul.addr %s124, 10
        %s128 = sadd.s32 %s126, %s127
        %s129 = smul.addr %s128, 4
        %s130 = scalar_lea.vmem %s0, %s129
        %s131 = smul.u32 2, %s16
      $region24: #{tpu_custom_call.1} parent=19 // pred_fallthru
        _
    $region20: #{tpu_custom_call.1} parent=5 // pred_fallthru
      _
    %p132 = scmp.le.s32.totalorder 1, %s8
    %p133 = scmp.lt.s32.totalorder %s8, 3
    %p134 = pnand %p132, %p133
    %p135 = pneg %p134
    // Predicated region
    $region25: #{tpu_custom_call.1} parent=5 // pred_check
      _
    $region26: #{tpu_custom_call.1} parent=5 // pred_check_branch
      %137 = sbr.rel (%p134) target = $region28
    $region27: #{tpu_custom_call.1} parent=5 // pred_region
      %s138 = ssub.s32 %s8, 1
      %s139 = smul.u32 2, %s18
      %p140 = scmp.lt.s32.totalorder %s17, 1
      %s141 = scalar_select %p140, %s17, 1
      %p142 = scmp.lt.s32.totalorder %s139, 1
      %s143 = scalar_select %p142, %s139, 1
      %s144 = smul.addr %s141, 10
      %s145 = sadd.s32 %s143, %s144
      %s146 = smul.addr %s145, 4
      %s147 = scalar_lea.vmem %s0, %s146
      %p148 = pneg %p48
      %p149 = pneg %p45
      %p150 = pneg %p69
      %p151 = pneg %p66
      %p152 = pneg %p97
      %p153 = pneg %p94
      %s154 = sadd.s32 %s17, %s18
      %p155 = scmp.lt.s32.totalorder %s154, 1
      %s156 = scalar_select %p155, %s154, 1
      %s157 = smul.addr %s156, 8
      %s158 = scalar_lea.vmem %s2, %s157
      %s159 = smul.u32 2, %s18
      %p160 = scmp.lt.s32.totalorder %s17, 1
      %s161 = scalar_select %p160, %s17, 1
      %p162 = scmp.lt.s32.totalorder %s159, 1
      %s163 = scalar_select %p162, %s159, 1
      %s164 = smul.addr %s161, 10
      %s165 = sadd.s32 %s163, %s164
      %s166 = smul.addr %s165, 4
      %s167 = scalar_lea.vmem %s0, %s166
      %s168 = smul.u32 2, %s18
      %s169 = sadd.s32 %s17, %s18
      %p170 = scmp.lt.s32.totalorder %s169, 1
      %s171 = scalar_select %p170, %s169, 1
      %s172 = smul.addr %s171, 8
      %s173 = scalar_lea.vmem %s2, %s172
      %s174 = sadd.s32 %s17, %s18
      %v176 = vld [vmem:[%s1] sm:$0xf]
      %v177 = vld [vmem:[%s167] sm:$0xff]
      %v178 = vld [vmem:[%s167 + $0x8] sm:$0xff]
      %v179 = vld [vmem:[%s167 + $0x10] sm:$0xff]
      %v180 = vld [vmem:[%s167 + $0x18] sm:$0xff]
      %v181 = vld [vmem:[%s167 + $0x20] sm:$0x33]
      %v187 = vunpack.c.l.b16 %v177
      %v188 = vunpack.c.h.b16 %v177
      %v189 = vunpack.c.l.b16 %v178
      %v190 = vunpack.c.h.b16 %v178
      %v191 = vunpack.c.l.b16 %v179
      %v192 = vunpack.c.h.b16 %v179
      %v193 = vunpack.c.l.b16 %v180
      %v194 = vunpack.c.h.b16 %v180
      %v195 = vunpack.c.l.b16 %v181
      %v196 = vunpack.c.h.b16 %v181
      %v197 = vpack.c.b16 %v189, %v187
      %v198 = vpack.c.b16 %v190, %v188
      %v199 = vpack.c.b16 %v193, %v191
      %v200 = vpack.c.b16 %v194, %v192
      %v201 = vpack.c.b16 %v195, %v195
      %v202 = vpack.c.b16 %v196, %v196
      %vm207 = vcmask 293888
      %v209 = vsel %vm207, %v176, 0
      %vm211 = vcmask 1041408
      %v213 = vsel %vm211, %v201, 0
      %v216 = vsel %vm211, %v202, 0
      %218 = vmatprep.subr.bf16.mxu0 0
      %219 = vmatpush1.bf16.msra.mxu0 0
      %220 = vmatprep.subr.bf16.mxu0 0
      %221 = vmatpush1.bf16.msra.mxu0 0
      %222 = vmatprep.subr.bf16.mxu0 0
      %223 = vmatpush1.bf16.msra.mxu0 0
      %224 = vmatprep.subr.bf16.mxu0 0
      %225 = vmatpush1.bf16.msra.mxu0 0
      %226 = vmatprep.subr.bf16.mxu0 0
      %227 = vmatpush1.bf16.msra.mxu0 0
      %228 = vmatprep.subr.bf16.mxu0 %v216
      %229 = vmatpush1.bf16.msra.mxu0 %v213
      %230 = vmatprep.subr.bf16.mxu0 %v200
      %231 = vmatpush1.bf16.msra.mxu0 %v199
      %232 = vmatprep.subr.bf16.mxu0 %v198
      %233 = vmatpush1.bf16.msra.mxu0 %v197
      %234 = vmatprep.subr.bf16.mxu0 0
      %235 = vmatpush2.bf16.msra.mxu0 0
      %236 = vmatprep.subr.bf16.mxu0 0
      %237 = vmatpush2.bf16.msra.mxu0 0
      %238 = vmatprep.subr.bf16.mxu0 0
      %239 = vmatpush2.bf16.msra.mxu0 0
      %240 = vmatprep.subr.bf16.mxu0 0
      %241 = vmatpush2.bf16.msra.mxu0 0
      %242 = vmatprep.subr.bf16.mxu0 0
      %243 = vmatpush2.bf16.msra.mxu0 0
      %244 = vmatprep.subr.bf16.mxu0 0
      %245 = vmatpush2.bf16.msra.mxu0 0
      %246 = vmatprep.subr.bf16.mxu0 0
      %247 = vmatpush2.bf16.msra.mxu0 0
      %248 = vmatprep.subr.bf16.mxu0 0
      %249 = vmatpush2.bf16.msra.mxu0 0
      %250 = vmatprep.mubr.bf16.mxu0 0
      %251 = vmatmul.mubr.bf16.gmra.mxu0 %v209
      %v252 = vpop.f32.mrf.mxu0
      %v253 = vadd.f32 0.0, %v252
      %v254 = vpop.f32.mrf.mxu0
      %v255 = vadd.f32 0.0, %v254
      %v256 = vpop.f32.mrf.mxu0
      %v257 = vpop.f32.mrf.mxu0
      %258 = vdwg.mxu0
      %v259 = vadd.f32 %v253, %v255
      %260 = vadd.xlane.f32.xlu0 %v259
      %v261 = vpop.xlane.xlu0 %260
      %vm262 = vcmask 7168
      %263 = vst.msk [vmem:[%s173] sm:$0xff] %vm262, %v261
      %v264 = vmul.f32 %v253, %v253
      %v265 = vmul.f32 %v255, %v255
      %v266 = vadd.f32 %v264, %v265
      %267 = vadd.xlane.f32.xlu0 %v266
      %v268 = vpop.xlane.xlu0 %267
      %vm269 = vcmask 15368
      %270 = vst.msk [vmem:[%s173] sm:$0xff] %vm269, %v268
      %s271 = sadd.s32 %s17, %s18
      %p272 = scmp.lt.s32.totalorder %s271, 1
      %s273 = scalar_select %p272, %s271, 1
      %s274 = smul.addr %s273, 8
      %s275 = scalar_lea.vmem %s2, %s274
      // Predicated region
      $region29: #{tpu_custom_call.1} parent=27 // pred_check
        %p276 = pneg %p94
      $region30: #{tpu_custom_call.1} parent=27 // pred_check_branch
        %278 = sbr.rel (%p276) target = $region32
      $region31: #{tpu_custom_call.1} parent=27 // pred_region
        %s279 = sadd.s32 %s17, %s18
      $region32: #{tpu_custom_call.1} parent=27 // pred_fallthru
        _
    $region28: #{tpu_custom_call.1} parent=5 // pred_fallthru
      _
    %p280 = scmp.le.s32.totalorder 2, %s8
    // Predicated region
    $region33: #{tpu_custom_call.1} parent=5 // pred_check
      %p281 = pneg %p280
    $region34: #{tpu_custom_call.1} parent=5 // pred_check_branch
      %283 = sbr.rel (%p281) target = $region36
    $region35: #{tpu_custom_call.1} parent=5 // pred_region
      %s284 = ssub.s32 %s8, 2
      // Predicated region
      $region37: #{tpu_custom_call.1} parent=35 // pred_check
        %p285 = pneg %p100
      $region38: #{tpu_custom_call.1} parent=35 // pred_check_branch
        %287 = sbr.rel (%p285) target = $region40
      $region39: #{tpu_custom_call.1} parent=35 // pred_region
        %s288 = sadd.s32 %s19, %s20
        %p289 = scmp.lt.s32.totalorder %s288, 1
        %s290 = scalar_select %p289, %s288, 1
        %s291 = smul.addr %s290, 8
        %s292 = scalar_lea.vmem %s2, %s291
      $region40: #{tpu_custom_call.1} parent=35 // pred_fallthru
        _
    $region36: #{tpu_custom_call.1} parent=5 // pred_fallthru
      _
  $region6: #{tpu_custom_call.1} parent=0 // loop_footer
    %s12 = sadd.s32 1, %s8
  $region7: #{tpu_custom_call.1} parent=0 // loop_footer_branch
    %7 = sbr.rel target = $region3
  $region8: #{tpu_custom_call.1} parent=0 // loop_exit
    _

</llo_original>
